<compile_context>
chip_gen: v5e
topology: v5e:2x2
jax: 0.10.0
libtpu: 0.0.40
codegen_flags: <defaults>
</compile_context>

<pallas_src>
import jax
import jax.numpy as jnp
from jax.experimental import pallas as pl
from jax.experimental.pallas import tpu as pltpu


def _round_up(x, m):
    return ((x + m - 1) // m) * m


def _vmem_capacity_bytes():
    """Per-core VMEM capacity; conservative v7x fallback if the query is unavailable."""
    try:
        return int(pltpu.get_tpu_info().vmem_capacity_bytes)
    except Exception:
        return 64 * 1024 * 1024


def _ffnnlm_kernel(x_ref, w1_ref, b1_ref, w2_ref, b2_ref, out_ref, h_scr):
    # grid = (batch tiles [parallel], vocab tiles [arbitrary, innermost]).
    # NOTE: all pl.program_id() calls stay at the TOP LEVEL of the kernel body
    # (never inside the pl.when sub-jaxpr) so lowering/interpretation is clean.
    v_is_first = pl.program_id(1) == 0

    @pl.when(v_is_first)
    def _compute_hidden():
        # h = relu(embeds @ W1 + b1): computed once per batch tile, cached in VMEM
        # scratch, and reused for every streamed w2 vocab tile.
        h = jnp.dot(x_ref[...], w1_ref[...], preferred_element_type=jnp.float32)
        h = jnp.maximum(h + b1_ref[...], 0.0)
        h_scr[...] = h.astype(h_scr.dtype)

    # Streamed second matmul: logits tile = h @ w2_tile + b2_tile.
    o = jnp.dot(h_scr[...], w2_ref[...], preferred_element_type=jnp.float32)
    out_ref[...] = (o + b2_ref[...]).astype(out_ref.dtype)


def ffnnlm_init(emb_table, w1, b1, w2, b2, *, param_dtype=jnp.float32,
                out_dtype=jnp.float32):
    """Pad + cast parameters ONCE (cache the result; never rebuild per forward call).

    emb_table: (V, E)         (== embeddings.weight)
    w1:        ((W-1)*E, H)   (== e2h.weight.T)
    b1:        (H,)
    w2:        (H, V)         (== h2o.weight.T)
    b2:        (V,)
    """
    V, E = emb_table.shape
    in_feat, H = w1.shape
    ctx = in_feat // E
    assert in_feat == ctx * E and w2.shape == (H, V)
    assert b1.shape == (H,) and b2.shape == (V,)

    f32 = jnp.float32
    itemsize = jnp.dtype(param_dtype).itemsize

    e_pad = _round_up(E, 128)
    h_pad = _round_up(H, 128)
    in_feat_pad = ctx * e_pad

    # Generation-aware vocab tile (w2 streaming width): biggest tile whose
    # worst-case VMEM footprint (double-buffered w2/out + resident w1/embeds/h)
    # fits comfortably in this generation's VMEM.
    cap = _vmem_capacity_bytes()
    budget = int(cap * 0.70)
    TB_MAX = 512
    tv = 128
    for cand in (2048, 1024, 512, 256, 128):
        need = (in_feat_pad * h_pad * itemsize            # w1 (resident)
                + 2 * TB_MAX * in_feat_pad * itemsize     # embeds block (2 buffers)
                + TB_MAX * h_pad * 4                      # hidden scratch (f32 worst case)
                + 2 * h_pad * cand * itemsize             # w2 tile (2 buffers)
                + 2 * TB_MAX * cand * 4                   # out tile (2 buffers)
                + 4 * (h_pad + cand) * 4)                 # biases
        if need <= budget:
            tv = cand
            break
    tv = min(tv, _round_up(V, 128))
    v_pad = _round_up(V, tv)

    # Zero padding keeps the numerics exact (padded hidden/vocab columns are 0).
    emb_p = jnp.zeros((V, e_pad), param_dtype).at[:, :E].set(
        emb_table.astype(param_dtype))
    # w1 rows laid out per token position: padded row index = pos * e_pad + feature.
    w1_p = jnp.zeros((ctx, e_pad, h_pad), param_dtype).at[:, :E, :H].set(
        w1.reshape(ctx, E, H).astype(param_dtype)).reshape(in_feat_pad, h_pad)
    b1_p = jnp.zeros((1, h_pad), f32).at[0, :H].set(b1.astype(f32))
    w2_p = jnp.zeros((h_pad, v_pad), param_dtype).at[:H, :V].set(w2.astype(param_dtype))
    b2_p = jnp.zeros((1, v_pad), f32).at[0, :V].set(b2.astype(f32))

    params = dict(emb=emb_p, w1=w1_p, b1=b1_p, w2=w2_p, b2=b2_p)
    cfg = dict(V=V, E=E, H=H, ctx=ctx, e_pad=e_pad, h_pad=h_pad,
               in_feat_pad=in_feat_pad, v_pad=v_pad, TV=tv,
               param_dtype=param_dtype, out_dtype=out_dtype,
               vmem_limit=min(int(cap * 0.85), 112 * 1024 * 1024))
    return params, cfg


def ffnnlm_forward(params, cfg, inputs):
    """Forward pass matching PyTorch FeedForwardNNLM.forward.  inputs: (B, W-1) int ids."""
    B, ctx = inputs.shape
    assert ctx == cfg["ctx"]
    in_feat_pad = cfg["in_feat_pad"]
    h_pad, v_pad, TV = cfg["h_pad"], cfg["v_pad"], cfg["TV"]
    pdt = cfg["param_dtype"]

    # Batch tile: up to 512 rows (keeps the streamed h @ w2 GEMM compute-bound),
    # but split into >= 2 tiles when possible so the "parallel" batch grid axis can
    # shard across TensorCores (v7x megacore).
    n_btiles = max(1, -(-B // 512))
    TB = _round_up(-(-B // n_btiles), 8)
    if n_btiles == 1 and TB >= 16:
        TB = _round_up(-(-TB // 2), 8)
    b_pad = _round_up(B, TB)

    # Vectorized embedding gather + concat in XLA (efficient TPU gather).  Only the
    # touched rows leave HBM; the table never has to be VMEM resident.
    ids = inputs.astype(jnp.int32)
    embeds = jnp.take(params["emb"], ids, axis=0).reshape(B, in_feat_pad)
    if b_pad != B:
        embeds = jnp.zeros((b_pad, in_feat_pad), pdt).at[:B].set(embeds)

    grid = (b_pad // TB, v_pad // TV)

    flops = 2 * b_pad * (in_feat_pad * h_pad + h_pad * v_pad)
    bytes_accessed = (embeds.nbytes
                      + params["w1"].nbytes + params["b1"].nbytes
                      + grid[0] * (params["w2"].nbytes + params["b2"].nbytes)  # re-streamed per batch tile
                      + b_pad * v_pad * jnp.dtype(cfg["out_dtype"]).itemsize)

    out = pl.pallas_call(
        _ffnnlm_kernel,
        out_shape=jax.ShapeDtypeStruct((b_pad, v_pad), cfg["out_dtype"]),
        grid_spec=pltpu.PrefetchScalarGridSpec(
            num_scalar_prefetch=0,
            grid=grid,
            in_specs=[
                pl.BlockSpec((TB, in_feat_pad), lambda b, v: (b, 0)),    # gathered embeds
                pl.BlockSpec((in_feat_pad, h_pad), lambda b, v: (0, 0)),  # w1 (resident)
                pl.BlockSpec((1, h_pad), lambda b, v: (0, 0)),            # b1 (resident)
                pl.BlockSpec((h_pad, TV), lambda b, v: (0, v)),           # w2 (streamed)
                pl.BlockSpec((1, TV), lambda b, v: (0, v)),               # b2 (streamed)
            ],
            out_specs=pl.BlockSpec((TB, TV), lambda b, v: (b, v)),
            scratch_shapes=[
                pltpu.VMEM((TB, h_pad), pdt),   # hidden, reused across vocab tiles
            ],
        ),
        compiler_params=pltpu.CompilerParams(
            dimension_semantics=("parallel", "arbitrary"),
            vmem_limit_bytes=cfg["vmem_limit"],
        ),
        cost_estimate=pl.CostEstimate(
            flops=int(flops), transcendentals=0, bytes_accessed=int(bytes_accessed)),
    )(embeds, params["w1"], params["b1"], params["w2"], params["b2"])

    return out[:B, :cfg["V"]]


if __name__ == "__main__":
    # Small, deterministic configuration consistent with the module.
    vocab_size = 32
    embedding_dim = 16
    window_size = 5          # context = window_size - 1 = 4 tokens
    hidden_dim = 32
    batch = 8
    ctx = window_size - 1

    key = jax.random.PRNGKey(0)
    k_emb, k_w1, k_b1, k_w2, k_b2, k_in = jax.random.split(key, 6)

    emb_table = jax.random.normal(k_emb, (vocab_size, embedding_dim), jnp.float32)
    w1 = jax.random.normal(k_w1, (ctx * embedding_dim, hidden_dim), jnp.float32) * 0.1
    b1 = jax.random.normal(k_b1, (hidden_dim,), jnp.float32) * 0.1
    w2 = jax.random.normal(k_w2, (hidden_dim, vocab_size), jnp.float32) * 0.1
    b2 = jax.random.normal(k_b2, (vocab_size,), jnp.float32) * 0.1

    inputs = jax.random.randint(k_in, (batch, ctx), 0, vocab_size, dtype=jnp.int32)

    # Pure-JAX reference (same semantics as the PyTorch forward).
    embeds_ref = jnp.take(emb_table, inputs, axis=0).reshape(batch, -1)
    hidden_ref = jnp.maximum(embeds_ref @ w1 + b1, 0.0)
    logits_ref = hidden_ref @ w2 + b2

    # f32 weights: exact semantics.
    params_f32, cfg_f32 = ffnnlm_init(emb_table, w1, b1, w2, b2,
                                      param_dtype=jnp.float32)
    out_f32 = jax.block_until_ready(ffnnlm_forward(params_f32, cfg_f32, inputs))
    assert out_f32.shape == (batch, vocab_size)
    assert jnp.allclose(out_f32, logits_ref, atol=1e-4, rtol=1e-4)

    # bf16 weights (v6e/v7x-friendly): f32 accumulation, looser tolerance.
    params_b16, cfg_b16 = ffnnlm_init(emb_table, w1, b1, w2, b2,
                                      param_dtype=jnp.bfloat16)
    out_b16 = jax.block_until_ready(ffnnlm_forward(params_b16, cfg_b16, inputs))
    assert jnp.allclose(out_b16, logits_ref, atol=5e-2, rtol=5e-2)

    print("KERNEL_OK")
</pallas_src>

<mosaic_0001>
module attributes {stable_mosaic.version = 11 : i64} {
  func.func @_ffnnlm_kernel(%arg0: i32, %arg1: i32, %arg2: memref<8x512xf32, #tpu.memory_space<vmem>>, %arg3: memref<512x128xf32, #tpu.memory_space<vmem>>, %arg4: memref<1x128xf32, #tpu.memory_space<vmem>>, %arg5: memref<128x128xf32, #tpu.memory_space<vmem>>, %arg6: memref<1x128xf32, #tpu.memory_space<vmem>>, %arg7: memref<8x128xf32, #tpu.memory_space<vmem>>, %arg8: memref<8x128xf32, #tpu.memory_space<vmem>>) attributes {dimension_semantics = [#tpu.dimension_semantics<parallel>, #tpu.dimension_semantics<arbitrary>], iteration_bounds = array<i64: 1, 1>, scalar_prefetch = 0 : i64, scratch_operands = 1 : i64, tpu.core_type = #tpu.core_type<tc>, window_params = [{transform_indices = @transform_0, window_bounds = array<i64: 8, 512>}, {pipeline_mode = #tpu.pipeline_mode<synchronous>, transform_indices = @transform_1, window_bounds = array<i64: 512, 128>}, {pipeline_mode = #tpu.pipeline_mode<synchronous>, transform_indices = @transform_2, window_bounds = array<i64: 1, 128>}, {transform_indices = @transform_3, window_bounds = array<i64: 128, 128>}, {transform_indices = @transform_4, window_bounds = array<i64: 1, 128>}, {transform_indices = @transform_5, window_bounds = array<i64: 8, 128>}]} {
    %c0_i32 = arith.constant 0 : i32
    %0 = arith.cmpi eq, %arg1, %c0_i32 : i32
    %1 = arith.extui %0 : i1 to i32
    %c0_i32_0 = arith.constant 0 : i32
    %2 = arith.cmpi ne, %1, %c0_i32_0 : i32
    scf.if %2 {
      %c0_8 = arith.constant 0 : index
      %c0_9 = arith.constant 0 : index
      %10 = vector.load %arg2[%c0_8, %c0_9] : memref<8x512xf32, #tpu.memory_space<vmem>>, vector<8x512xf32>
      %c0_10 = arith.constant 0 : index
      %c0_11 = arith.constant 0 : index
      %11 = vector.load %arg3[%c0_10, %c0_11] : memref<512x128xf32, #tpu.memory_space<vmem>>, vector<512x128xf32>
      %cst_12 = arith.constant dense<0.000000e+00> : vector<8x128xf32>
      %12 = tpu.matmul %10, %11, %cst_12 {dimension_numbers = #tpu.dot_dimension_numbers<[1], [0], [0], [1], [0, 0, 1, 1], [], []>} : vector<8x512xf32>, vector<512x128xf32>, vector<8x128xf32> -> vector<8x128xf32>
      %c0_13 = arith.constant 0 : index
      %c0_14 = arith.constant 0 : index
      %13 = vector.load %arg4[%c0_13, %c0_14] : memref<1x128xf32, #tpu.memory_space<vmem>>, vector<1x128xf32>
      %14 = vector.broadcast %13 : vector<1x128xf32> to vector<8x128xf32>
      %15 = arith.addf %12, %14 : vector<8x128xf32>
      %cst_15 = arith.constant 0.000000e+00 : f32
      %16 = vector.broadcast %cst_15 : f32 to vector<8x128xf32>
      %17 = arith.maximumf %15, %16 : vector<8x128xf32>
      %c0_16 = arith.constant 0 : index
      %c0_17 = arith.constant 0 : index
      %18 = vector.load %arg8[%c0_16, %c0_17] : memref<8x128xf32, #tpu.memory_space<vmem>>, vector<8x128xf32>
      tpu.vector_store %arg8[%c0_16, %c0_17], %17 {strides = array<i32>} : memref<8x128xf32, #tpu.memory_space<vmem>>, vector<8x128xf32>,
    } else {
    }
    %c0 = arith.constant 0 : index
    %c0_1 = arith.constant 0 : index
    %3 = vector.load %arg8[%c0, %c0_1] : memref<8x128xf32, #tpu.memory_space<vmem>>, vector<8x128xf32>
    %c0_2 = arith.constant 0 : index
    %c0_3 = arith.constant 0 : index
    %4 = vector.load %arg5[%c0_2, %c0_3] : memref<128x128xf32, #tpu.memory_space<vmem>>, vector<128x128xf32>
    %cst = arith.constant dense<0.000000e+00> : vector<8x128xf32>
    %5 = tpu.matmul %3, %4, %cst {dimension_numbers = #tpu.dot_dimension_numbers<[1], [0], [0], [1], [0, 0, 1, 1], [], []>} : vector<8x128xf32>, vector<128x128xf32>, vector<8x128xf32> -> vector<8x128xf32>
    %c0_4 = arith.constant 0 : index
    %c0_5 = arith.constant 0 : index
    %6 = vector.load %arg6[%c0_4, %c0_5] : memref<1x128xf32, #tpu.memory_space<vmem>>, vector<1x128xf32>
    %7 = vector.broadcast %6 : vector<1x128xf32> to vector<8x128xf32>
    %8 = arith.addf %5, %7 : vector<8x128xf32>
    %c0_6 = arith.constant 0 : index
    %c0_7 = arith.constant 0 : index
    %9 = vector.load %arg7[%c0_6, %c0_7] : memref<8x128xf32, #tpu.memory_space<vmem>>, vector<8x128xf32>
    tpu.vector_store %arg7[%c0_6, %c0_7], %8 {strides = array<i32>} : memref<8x128xf32, #tpu.memory_space<vmem>>, vector<8x128xf32>,
    return
  }
  func.func @transform_0(%arg0: i32, %arg1: i32) -> (i32, i32) {
    %c0_i32 = arith.constant 0 : i32
    %c0_i32_0 = arith.constant 0 : i32
    return %arg0, %c0_i32 : i32, i32
  }
  func.func @transform_1(%arg0: i32, %arg1: i32) -> (i32, i32) {
    %c0_i32 = arith.constant 0 : i32
    %c0_i32_0 = arith.constant 0 : i32
    %c0_i32_1 = arith.constant 0 : i32
    return %c0_i32, %c0_i32_0 : i32, i32
  }
  func.func @transform_2(%arg0: i32, %arg1: i32) -> (i32, i32) {
    %c0_i32 = arith.constant 0 : i32
    %c0_i32_0 = arith.constant 0 : i32
    %c0_i32_1 = arith.constant 0 : i32
    return %c0_i32, %c0_i32_0 : i32, i32
  }
  func.func @transform_3(%arg0: i32, %arg1: i32) -> (i32, i32) {
    %c0_i32 = arith.constant 0 : i32
    %c0_i32_0 = arith.constant 0 : i32
    return %c0_i32, %arg1 : i32, i32
  }
  func.func @transform_4(%arg0: i32, %arg1: i32) -> (i32, i32) {
    %c0_i32 = arith.constant 0 : i32
    %c0_i32_0 = arith.constant 0 : i32
    return %c0_i32, %arg1 : i32, i32
  }
  func.func @transform_5(%arg0: i32, %arg1: i32) -> (i32, i32) {
    %c0_i32 = arith.constant 0 : i32
    return %arg0, %arg1 : i32, i32
  }
}

</mosaic_0001>

<llo_original>
// kernel: tpu_custom_call.1
$region0: #{tpu_custom_call.1}
  #allocation0 [shape = 'u32[]', space=smem, size = 0x4, offset = 0x4, fixed_abs, tag = 'smem constant byte address 0x4 - core index']
  #allocation1 [shape = 'u32[72,128]{1,0:T(1,128)}', space=vmem, size = 0x9000, scoped, tag = 'internal scratch']
  #allocation2 [shape = 'f32[8,128]{1,0:T(8,128)}', space=vmem, size = 0x1000, scoped, tag = 'scratch operand']
  %s0 = inlined_call_operand.hbm [shape: f32[8,512], index: 0, kind: input, shape index: {}]
  %s1 = inlined_call_operand.hbm [shape: f32[512,128], index: 1, kind: input, shape index: {}]
  %s2 = inlined_call_operand.vmem [shape: f32[1,128], index: 2, kind: input, shape index: {}]
  %s3 = inlined_call_operand.hbm [shape: f32[128,128], index: 3, kind: input, shape index: {}]
  %s4 = inlined_call_operand.vmem [shape: f32[1,128], index: 4, kind: input, shape index: {}]
  %s5 = inlined_call_operand.hbm [shape: f32[8,128], index: 5, kind: output, shape index: {}]
  %s6 = sld [smem:[#allocation0]]
  $region46: #{tpu_custom_call.1} parent=0
    _
  %s8 = ssub.s32 1, %s6
  %s9 = scalar_select 0, %s8, %s6
  $region1: #{tpu_custom_call.1} parent=0
    #allocation3 [shape = 'u8[16384]{0}', space=vmem, size = 0x4000, scoped, tag = 'input window, operand 0, single buffered']
    #allocation4 [shape = 's32[1]{0}', space=sflag, size = 0x4, scoped, tag = 'scoped memory for tpu_custom_call.1']
    #allocation5 [shape = 's32[1]{0}', space=sflag, size = 0x4, scoped, tag = 'scoped memory for tpu_custom_call.1']
    #allocation6 [shape = 'u8[262144]{0}', space=vmem, size = 0x40000, scoped, tag = 'input window, operand 1, single buffered']
    #allocation7 [shape = 's32[1]{0}', space=sflag, size = 0x4, scoped, tag = 'scoped memory for tpu_custom_call.1']
    #allocation8 [shape = 'u8[65536]{0}', space=vmem, size = 0x10000, scoped, tag = 'input window, operand 3, single buffered']
    #allocation9 [shape = 'u8[4096]{0}', space=vmem, size = 0x1000, scoped, tag = 'output window, operand 0, single buffered']
    %10 = vsyncpa [#allocation4], 0
    %11 = vsyncpa [#allocation7], 0
    %12 = vsyncpa [#allocation5], 0
    // Predicated region
    $region2: #{tpu_custom_call.1} parent=1 // pred_check
      _
    $region3: #{tpu_custom_call.1} parent=1 // pred_check_branch
      %14 = sbr.rel (0) target = $region5
    $region4: #{tpu_custom_call.1} parent=1 // pred_region
      %16 = vsyncadd [#allocation4], 0
      %s18 = sshll.u32 %s0, 4
      %s19 = int_to_ptr.hbm [resolvable:$true] %s18
      %s20 = sshll.u32 [#allocation3], 4
      %s21 = int_to_ptr.vmem [resolvable:$true] %s20
      %23 = dma.hbm_to_vmem [thread:$0]  %s19, 512, %s21, [#allocation4]
    $region5: #{tpu_custom_call.1} parent=1 // pred_fallthru
      _
    // Predicated region
    $region6: #{tpu_custom_call.1} parent=1 // pred_check
      _
    $region7: #{tpu_custom_call.1} parent=1 // pred_check_branch
      %25 = sbr.rel (0) target = $region9
    $region8: #{tpu_custom_call.1} parent=1 // pred_region
      %27 = vsyncadd [#allocation7], 0
      %s28 = sshll.u32 %s1, 4
      %s29 = int_to_ptr.hbm [resolvable:$true] %s28
      %s30 = sshll.u32 [#allocation6], 4
      %s31 = int_to_ptr.vmem [resolvable:$true] %s30
      %36 = dma.hbm_to_vmem [thread:$0]  %s29, 8192, %s31, [#allocation7], 128, 128, 8
    $region9: #{tpu_custom_call.1} parent=1 // pred_fallthru
      _
    // Predicated region
    $region10: #{tpu_custom_call.1} parent=1 // pred_check
      _
    $region11: #{tpu_custom_call.1} parent=1 // pred_check_branch
      %38 = sbr.rel (0) target = $region13
    $region12: #{tpu_custom_call.1} parent=1 // pred_region
      _
    $region13: #{tpu_custom_call.1} parent=1 // pred_fallthru
      _
    // Predicated region
    $region14: #{tpu_custom_call.1} parent=1 // pred_check
      _
    $region15: #{tpu_custom_call.1} parent=1 // pred_check_branch
      %40 = sbr.rel (0) target = $region17
    $region16: #{tpu_custom_call.1} parent=1 // pred_region
      %42 = vsyncadd [#allocation7], 0
      %s43 = sshll.u32 %s3, 4
      %s44 = int_to_ptr.hbm [resolvable:$true] %s43
      %s45 = sshll.u32 [#allocation8], 4
      %s46 = int_to_ptr.vmem [resolvable:$true] %s45
      %51 = dma.hbm_to_vmem [thread:$0]  %s44, 2048, %s46, [#allocation7], 128, 128, 8
    $region17: #{tpu_custom_call.1} parent=1 // pred_fallthru
      _
    // Predicated region
    $region18: #{tpu_custom_call.1} parent=1 // pred_check
      _
    $region19: #{tpu_custom_call.1} parent=1 // pred_check_branch
      %53 = sbr.rel (0) target = $region21
    $region20: #{tpu_custom_call.1} parent=1 // pred_region
      _
    $region21: #{tpu_custom_call.1} parent=1 // pred_fallthru
      _
    // Predicated region
    $region22: #{tpu_custom_call.1} parent=1 // pred_check
      _
    $region23: #{tpu_custom_call.1} parent=1 // pred_check_branch
      %55 = sbr.rel (0) target = $region25
    $region24: #{tpu_custom_call.1} parent=1 // pred_region
      %57 = dma.done [#allocation4], 512
    $region25: #{tpu_custom_call.1} parent=1 // pred_fallthru
      _
    // Predicated region
    $region26: #{tpu_custom_call.1} parent=1 // pred_check
      _
    $region27: #{tpu_custom_call.1} parent=1 // pred_check_branch
      %59 = sbr.rel (0) target = $region29
    $region28: #{tpu_custom_call.1} parent=1 // pred_region
      %61 = dma.done [#allocation7], 8192
    $region29: #{tpu_custom_call.1} parent=1 // pred_fallthru
      _
    // Predicated region
    $region30: #{tpu_custom_call.1} parent=1 // pred_check
      _
    $region31: #{tpu_custom_call.1} parent=1 // pred_check_branch
      %63 = sbr.rel (0) target = $region33
    $region32: #{tpu_custom_call.1} parent=1 // pred_region
      %65 = dma.done [#allocation7], 2048
    $region33: #{tpu_custom_call.1} parent=1 // pred_fallthru
      _
    %p66 = scmp.eq.s32.totalorder 0, 0
    // Predicated region
    $region34: #{tpu_custom_call.1} parent=1 // pred_check
      %p67 = pneg %p66
    $region35: #{tpu_custom_call.1} parent=1 // pred_check_branch
      %69 = sbr.rel (%p67) target = $region37
    $region36: #{tpu_custom_call.1} parent=1 // pred_region
      %v70 = vld [vmem:[#allocation3] sm:$0xff]
      %v71 = vld [vmem:[#allocation3 + $0x8] sm:$0xff]
      %v72 = vld [vmem:[#allocation3 + $0x10] sm:$0xff]
      %v73 = vld [vmem:[#allocation3 + $0x18] sm:$0xff]
      %v74 = vld [vmem:[#allocation6] sm:$0xff]
      %v75 = vld [vmem:[#allocation6 + $0x8] sm:$0xff]
      %v76 = vld [vmem:[#allocation6 + $0x10] sm:$0xff]
      %v77 = vld [vmem:[#allocation6 + $0x18] sm:$0xff]
      %v78 = vld [vmem:[#allocation6 + $0x20] sm:$0xff]
      %v79 = vld [vmem:[#allocation6 + $0x28] sm:$0xff]
      %v80 = vld [vmem:[#allocation6 + $0x30] sm:$0xff]
      %v81 = vld [vmem:[#allocation6 + $0x38] sm:$0xff]
      %v82 = vld [vmem:[#allocation6 + $0x40] sm:$0xff]
      %v83 = vld [vmem:[#allocation6 + $0x48] sm:$0xff]
      %v84 = vld [vmem:[#allocation6 + $0x50] sm:$0xff]
      %v85 = vld [vmem:[#allocation6 + $0x58] sm:$0xff]
      %v86 = vld [vmem:[#allocation6 + $0x60] sm:$0xff]
      %v87 = vld [vmem:[#allocation6 + $0x68] sm:$0xff]
      %v88 = vld [vmem:[#allocation6 + $0x70] sm:$0xff]
      %v89 = vld [vmem:[#allocation6 + $0x78] sm:$0xff]
      %v90 = vld [vmem:[#allocation6 + $0x80] sm:$0xff]
      %v91 = vld [vmem:[#allocation6 + $0x88] sm:$0xff]
      %v92 = vld [vmem:[#allocation6 + $0x90] sm:$0xff]
      %v93 = vld [vmem:[#allocation6 + $0x98] sm:$0xff]
      %v94 = vld [vmem:[#allocation6 + $0xa0] sm:$0xff]
      %v95 = vld [vmem:[#allocation6 + $0xa8] sm:$0xff]
      %v96 = vld [vmem:[#allocation6 + $0xb0] sm:$0xff]
      %v97 = vld [vmem:[#allocation6 + $0xb8] sm:$0xff]
      %v98 = vld [vmem:[#allocation6 + $0xc0] sm:$0xff]
      %v99 = vld [vmem:[#allocation6 + $0xc8] sm:$0xff]
      %v100 = vld [vmem:[#allocation6 + $0xd0] sm:$0xff]
      %v101 = vld [vmem:[#allocation6 + $0xd8] sm:$0xff]
      %v102 = vld [vmem:[#allocation6 + $0xe0] sm:$0xff]
      %v103 = vld [vmem:[#allocation6 + $0xe8] sm:$0xff]
      %v104 = vld [vmem:[#allocation6 + $0xf0] sm:$0xff]
      %v105 = vld [vmem:[#allocation6 + $0xf8] sm:$0xff]
      %v106 = vld [vmem:[#allocation6 + $0x100] sm:$0xff]
      %v107 = vld [vmem:[#allocation6 + $0x108] sm:$0xff]
      %v108 = vld [vmem:[#allocation6 + $0x110] sm:$0xff]
      %v109 = vld [vmem:[#allocation6 + $0x118] sm:$0xff]
      %v110 = vld [vmem:[#allocation6 + $0x120] sm:$0xff]
      %v111 = vld [vmem:[#allocation6 + $0x128] sm:$0xff]
      %v112 = vld [vmem:[#allocation6 + $0x130] sm:$0xff]
      %v113 = vld [vmem:[#allocation6 + $0x138] sm:$0xff]
      %v114 = vld [vmem:[#allocation6 + $0x140] sm:$0xff]
      %v115 = vld [vmem:[#allocation6 + $0x148] sm:$0xff]
      %v116 = vld [vmem:[#allocation6 + $0x150] sm:$0xff]
      %v117 = vld [vmem:[#allocation6 + $0x158] sm:$0xff]
      %v118 = vld [vmem:[#allocation6 + $0x160] sm:$0xff]
      %v119 = vld [vmem:[#allocation6 + $0x168] sm:$0xff]
      %v120 = vld [vmem:[#allocation6 + $0x170] sm:$0xff]
      %v121 = vld [vmem:[#allocation6 + $0x178] sm:$0xff]
      %v122 = vld [vmem:[#allocation6 + $0x180] sm:$0xff]
      %v123 = vld [vmem:[#allocation6 + $0x188] sm:$0xff]
      %v124 = vld [vmem:[#allocation6 + $0x190] sm:$0xff]
      %v125 = vld [vmem:[#allocation6 + $0x198] sm:$0xff]
      %v126 = vld [vmem:[#allocation6 + $0x1a0] sm:$0xff]
      %v127 = vld [vmem:[#allocation6 + $0x1a8] sm:$0xff]
      %v128 = vld [vmem:[#allocation6 + $0x1b0] sm:$0xff]
      %v129 = vld [vmem:[#allocation6 + $0x1b8] sm:$0xff]
      %v130 = vld [vmem:[#allocation6 + $0x1c0] sm:$0xff]
      %v131 = vld [vmem:[#allocation6 + $0x1c8] sm:$0xff]
      %v132 = vld [vmem:[#allocation6 + $0x1d0] sm:$0xff]
      %v133 = vld [vmem:[#allocation6 + $0x1d8] sm:$0xff]
      %v134 = vld [vmem:[#allocation6 + $0x1e0] sm:$0xff]
      %v135 = vld [vmem:[#allocation6 + $0x1e8] sm:$0xff]
      %v136 = vld [vmem:[#allocation6 + $0x1f0] sm:$0xff]
      %v137 = vld [vmem:[#allocation6 + $0x1f8] sm:$0xff]
      %v138 = vld [vmem:[%s2] sm:$0x1]
      %v140 = vperm.slane %v138, 0
      %142 = vmatpush.msra.mxu0 %v89
      %143 = vmatpush.msra.mxu0 %v88
      %144 = vmatpush.msra.mxu0 %v87
      %145 = vmatpush.msra.mxu0 %v86
      %146 = vmatpush.msra.mxu0 %v85
      %147 = vmatpush.msra.mxu0 %v84
      %148 = vmatpush.msra.mxu0 %v83
      %149 = vmatpush.msra.mxu0 %v82
      %150 = vmatpush.msra.mxu0 %v81
      %151 = vmatpush.msra.mxu0 %v80
      %152 = vmatpush.msra.mxu0 %v79
      %153 = vmatpush.msra.mxu0 %v78
      %154 = vmatpush.msra.mxu0 %v77
      %155 = vmatpush.msra.mxu0 %v76
      %156 = vmatpush.msra.mxu0 %v75
      %157 = vmatpush.msra.mxu0 %v74
      %158 = vmatmul.f32.gmra.mxu0 %v70
      %v159 = vpop.f32.mrf.mxu0
      %v160 = vadd.f32 %v140, %v159
      %161 = vdwg.mxu0
      %162 = vmatpush.msra.mxu0 %v105
      %163 = vmatpush.msra.mxu0 %v104
      %164 = vmatpush.msra.mxu0 %v103
      %165 = vmatpush.msra.mxu0 %v102
      %166 = vmatpush.msra.mxu0 %v101
      %167 = vmatpush.msra.mxu0 %v100
      %168 = vmatpush.msra.mxu0 %v99
      %169 = vmatpush.msra.mxu0 %v98
      %170 = vmatpush.msra.mxu0 %v97
      %171 = vmatpush.msra.mxu0 %v96
      %172 = vmatpush.msra.mxu0 %v95
      %173 = vmatpush.msra.mxu0 %v94
      %174 = vmatpush.msra.mxu0 %v93
      %175 = vmatpush.msra.mxu0 %v92
      %176 = vmatpush.msra.mxu0 %v91
      %177 = vmatpush.msra.mxu0 %v90
      %178 = vmatmul.f32.gmra.mxu0 %v71
      %v179 = vpop.f32.mrf.mxu0
      %v180 = vadd.f32 %v160, %v179
      %181 = vdwg.mxu0
      %182 = vmatpush.msra.mxu0 %v121
      %183 = vmatpush.msra.mxu0 %v120
      %184 = vmatpush.msra.mxu0 %v119
      %185 = vmatpush.msra.mxu0 %v118
      %186 = vmatpush.msra.mxu0 %v117
      %187 = vmatpush.msra.mxu0 %v116
      %188 = vmatpush.msra.mxu0 %v115
      %189 = vmatpush.msra.mxu0 %v114
      %190 = vmatpush.msra.mxu0 %v113
      %191 = vmatpush.msra.mxu0 %v112
      %192 = vmatpush.msra.mxu0 %v111
      %193 = vmatpush.msra.mxu0 %v110
      %194 = vmatpush.msra.mxu0 %v109
      %195 = vmatpush.msra.mxu0 %v108
      %196 = vmatpush.msra.mxu0 %v107
      %197 = vmatpush.msra.mxu0 %v106
      %198 = vmatmul.f32.gmra.mxu0 %v72
      %v199 = vpop.f32.mrf.mxu0
      %v200 = vadd.f32 %v180, %v199
      %201 = vdwg.mxu0
      %202 = vmatpush.msra.mxu0 %v137
      %203 = vmatpush.msra.mxu0 %v136
      %204 = vmatpush.msra.mxu0 %v135
      %205 = vmatpush.msra.mxu0 %v134
      %206 = vmatpush.msra.mxu0 %v133
      %207 = vmatpush.msra.mxu0 %v132
      %208 = vmatpush.msra.mxu0 %v131
      %209 = vmatpush.msra.mxu0 %v130
      %210 = vmatpush.msra.mxu0 %v129
      %211 = vmatpush.msra.mxu0 %v128
      %212 = vmatpush.msra.mxu0 %v127
      %213 = vmatpush.msra.mxu0 %v126
      %214 = vmatpush.msra.mxu0 %v125
      %215 = vmatpush.msra.mxu0 %v124
      %216 = vmatpush.msra.mxu0 %v123
      %217 = vmatpush.msra.mxu0 %v122
      %218 = vmatmul.f32.gmra.mxu0 %v73
      %v219 = vpop.f32.mrf.mxu0
      %v220 = vadd.f32 %v200, %v219
      %221 = vdwg.mxu0
      %v222 = vmax.f32 %v220, 0.0
      %223 = vst [vmem:[#allocation2] sm:$0xff] %v222
    $region37: #{tpu_custom_call.1} parent=1 // pred_fallthru
      _
    %v224 = vld [vmem:[#allocation2] sm:$0xff]
    %v225 = vld [vmem:[#allocation8] sm:$0xff]
    %v226 = vld [vmem:[#allocation8 + $0x8] sm:$0xff]
    %v227 = vld [vmem:[#allocation8 + $0x10] sm:$0xff]
    %v228 = vld [vmem:[#allocation8 + $0x18] sm:$0xff]
    %v229 = vld [vmem:[#allocation8 + $0x20] sm:$0xff]
    %v230 = vld [vmem:[#allocation8 + $0x28] sm:$0xff]
    %v231 = vld [vmem:[#allocation8 + $0x30] sm:$0xff]
    %v232 = vld [vmem:[#allocation8 + $0x38] sm:$0xff]
    %v233 = vld [vmem:[#allocation8 + $0x40] sm:$0xff]
    %v234 = vld [vmem:[#allocation8 + $0x48] sm:$0xff]
    %v235 = vld [vmem:[#allocation8 + $0x50] sm:$0xff]
    %v236 = vld [vmem:[#allocation8 + $0x58] sm:$0xff]
    %v237 = vld [vmem:[#allocation8 + $0x60] sm:$0xff]
    %v238 = vld [vmem:[#allocation8 + $0x68] sm:$0xff]
    %v239 = vld [vmem:[#allocation8 + $0x70] sm:$0xff]
    %v240 = vld [vmem:[#allocation8 + $0x78] sm:$0xff]
    %v241 = vld [vmem:[%s4] sm:$0x1]
    %v243 = vperm.slane %v241, 0
    %245 = vmatpush.msra.mxu0 %v240
    %246 = vmatpush.msra.mxu0 %v239
    %247 = vmatpush.msra.mxu0 %v238
    %248 = vmatpush.msra.mxu0 %v237
    %249 = vmatpush.msra.mxu0 %v236
    %250 = vmatpush.msra.mxu0 %v235
    %251 = vmatpush.msra.mxu0 %v234
    %252 = vmatpush.msra.mxu0 %v233
    %253 = vmatpush.msra.mxu0 %v232
    %254 = vmatpush.msra.mxu0 %v231
    %255 = vmatpush.msra.mxu0 %v230
    %256 = vmatpush.msra.mxu0 %v229
    %257 = vmatpush.msra.mxu0 %v228
    %258 = vmatpush.msra.mxu0 %v227
    %259 = vmatpush.msra.mxu0 %v226
    %260 = vmatpush.msra.mxu0 %v225
    %261 = vmatmul.f32.gmra.mxu0 %v224
    %v262 = vpop.f32.mrf.mxu0
    %v263 = vadd.f32 %v243, %v262
    %264 = vdwg.mxu0
    %265 = vst [vmem:[#allocation9] sm:$0xff] %v263
    // Predicated region
    $region38: #{tpu_custom_call.1} parent=1 // pred_check
      _
    $region39: #{tpu_custom_call.1} parent=1 // pred_check_branch
      %267 = sbr.rel (0) target = $region41
    $region40: #{tpu_custom_call.1} parent=1 // pred_region
      %269 = vsyncadd [#allocation5], 0
      %s271 = sshll.u32 [#allocation9], 4
      %s272 = int_to_ptr.vmem [resolvable:$true] %s271
      %s273 = sshll.u32 %s5, 4
      %s274 = int_to_ptr.hbm [resolvable:$true] %s273
      %276 = dma.vmem_to_hbm [thread:$0]  %s272, 128, %s274, [#allocation5]
    $region41: #{tpu_custom_call.1} parent=1 // pred_fallthru
      _
    // Predicated region
    $region42: #{tpu_custom_call.1} parent=1 // pred_check
      _
    $region43: #{tpu_custom_call.1} parent=1 // pred_check_branch
      %278 = sbr.rel (0) target = $region45
    $region44: #{tpu_custom_call.1} parent=1 // pred_region
      %280 = dma.done [#allocation5], 128
    $region45: #{tpu_custom_call.1} parent=1 // pred_fallthru
      _
    %281 = vsyncpa [#allocation4], 1
    %282 = vsyncpa [#allocation7], 1
    %283 = vsyncpa [#allocation5], 1

</llo_original>
